<compile_context>
chip_gen: v7x
topology: tpu7x:2x2x1
jax: 0.10.0
libtpu: 0.0.40
codegen_flags: <defaults>
</compile_context>

<pallas_src>
import functools
import math

import jax
import jax.numpy as jnp
from jax import lax
from jax.experimental import pallas as pl
from jax.experimental.pallas import tpu as pltpu

N_EMBD = 64
HIDDEN = 4 * N_EMBD

_INV_SQRT2 = 0.7071067811865476          # for the exact-erf reference only
_SQRT_2_OVER_PI = 0.7978845608028654      # tanh-approx GELU constant


def _round_up(a, b):
    return ((a + b - 1) // b) * b


def _ffn_kernel(x_ref, w1_ref, b1_ref, w2_ref, b2_ref, o_ref, *, act_dtype):
    # x_ref: (tm2, PE) f32 | w1: (PE, PH) bf16 | b1: (1, PH) f32
    # w2: (PH, PE) bf16    | b2: (1, PE) f32   | o: (tm2, PE) f32
    xb = x_ref[...].astype(jnp.bfloat16)

    # First linear on the MXU (bf16 operands, f32 accumulation) + bias.
    h = jnp.dot(xb, w1_ref[...], preferred_element_type=jnp.float32) + b1_ref[...]
    h = h.astype(act_dtype)

    # tanh-approximate GELU: tanh goes to the EUP slot, leaving only a few
    # VALU mul/adds per element (bf16 on v6e/v7x halves those again).
    u = _SQRT_2_OVER_PI * (h + 0.044715 * (h * h * h))
    h = 0.5 * h * (1.0 + jnp.tanh(u))

    # Second linear on the MXU + bias (f32 accumulation).
    y = jnp.dot(h.astype(jnp.bfloat16), w2_ref[...],
                preferred_element_type=jnp.float32) + b2_ref[...]

    # TODO(synk): training-mode dropout (p=0.1) would need pltpu.prng_seed +
    #             pltpu.stateful_bernoulli and cannot match torch's RNG
    #             stream; eval mode => identity.
    o_ref[...] = y.astype(o_ref.dtype)


def _block_diag(w, p):
    """(E, H) -> (p*E, p*H) block-diagonal replication of w."""
    if p == 1:
        return w
    e, h = w.shape
    out = jnp.zeros((p * e, p * h), w.dtype)
    for i in range(p):
        out = out.at[i * e:(i + 1) * e, i * h:(i + 1) * h].set(w)
    return out


def _chip_defaults():
    """Per-generation tile / VMEM-budget / activation-dtype defaults."""
    try:
        kind = jax.devices()[0].device_kind.lower()
    except Exception:
        kind = ""
    if "v2" in kind or "v3" in kind:       # tiny VMEM, be conservative
        return dict(tm_pairs=512, min_steps=2, act_dtype=jnp.float32,
                    vmem_limit=None)
    if "v5" in kind:                        # v5e/v5p: no bf16 VPU/EUP
        return dict(tm_pairs=2048, min_steps=2, act_dtype=jnp.float32,
                    vmem_limit=64 << 20)
    if "v7" in kind:                        # v7x: 64 MiB VMEM, 2 TCs/chip
        return dict(tm_pairs=2048, min_steps=8, act_dtype=jnp.bfloat16,
                    vmem_limit=48 << 20)
    # v6e / v4 / unknown: plenty of VMEM
    return dict(tm_pairs=4096, min_steps=2, act_dtype=jnp.bfloat16,
                vmem_limit=80 << 20)


def prepare_params(w1, b1, w2, b2):
    """One-time weight prep: block-diag replication, bf16 cast, bias tiling.

    Call once and reuse; re-running these XLA ops per forward call costs as
    much HBM traffic as the kernel itself at small batch.
    """
    E, H = w1.shape
    P = 128 // E if (E < 128 and 128 % E == 0) else 1
    w1p = _block_diag(w1, P).astype(jnp.bfloat16)          # (PE, PH)
    w2p = _block_diag(w2, P).astype(jnp.bfloat16)          # (PH, PE)
    b1p = jnp.tile(b1.reshape(1, H), (1, P)).astype(jnp.float32)   # (1, PH)
    b2p = jnp.tile(b2.reshape(1, E), (1, P)).astype(jnp.float32)   # (1, PE)
    return w1p, b1p, w2p, b2p


def feedforward(x, w1p, b1p, w2p, b2p, *, tm_pairs=None):
    """x: (B, T, E) float32 -> (B, T, E) float32 (eval-mode FeedForward)."""
    B, T, E = x.shape
    PE, PH = w1p.shape
    P = PE // E
    M = B * T

    cfg = _chip_defaults()
    act_dtype = cfg["act_dtype"]
    if tm_pairs is None:
        tm_pairs = cfg["tm_pairs"]

    # Fold P rows into one 128-lane row (lane-dense I/O, no masked stores).
    x2 = x.reshape(M, E)
    M2 = pl.cdiv(M, P)
    if M2 * P != M:                         # only when M is odd (tiny pad)
        x2 = jnp.pad(x2, ((0, M2 * P - M), (0, 0)))
    xp = x2.reshape(M2, PE)
    if M2 < 8:                              # degenerate tiny input: pad to 8 sublanes
        xp = jnp.pad(xp, ((0, 8 - M2), (0, 0)))
    Mrows = xp.shape[0]

    # Row tile (paired rows): big (kernel is HBM-bound once GELU is on the
    # EUP), multiple of 8 sublanes, clamped so the grid keeps >= min_steps
    # steps when possible (megacore sharding on the "parallel" axis).
    cap = _round_up(pl.cdiv(Mrows, cfg["min_steps"]), 8)
    tm2 = max(8, min(_round_up(tm_pairs, 8), cap))

    # Ragged last block is handled by Pallas (reads pad, writes masked) — no
    # wrapper-side pad/slice of the activation slab.
    grid = (pl.cdiv(Mrows, tm2),)

    kernel = functools.partial(_ffn_kernel, act_dtype=act_dtype)

    out = pl.pallas_call(
        kernel,
        out_shape=jax.ShapeDtypeStruct((Mrows, PE), x.dtype),
        grid_spec=pltpu.PrefetchScalarGridSpec(
            num_scalar_prefetch=0,
            grid=grid,
            in_specs=[
                pl.BlockSpec((tm2, PE), lambda i: (i, 0)),   # x rows (paired)
                pl.BlockSpec((PE, PH), lambda i: (0, 0)),    # W1 (block-diag)
                pl.BlockSpec((1, PH), lambda i: (0, 0)),     # b1
                pl.BlockSpec((PH, PE), lambda i: (0, 0)),    # W2 (block-diag)
                pl.BlockSpec((1, PE), lambda i: (0, 0)),     # b2
            ],
            out_specs=pl.BlockSpec((tm2, PE), lambda i: (i, 0)),
        ),
        compiler_params=pltpu.CompilerParams(
            dimension_semantics=("parallel",),
            vmem_limit_bytes=cfg["vmem_limit"]),
    )(xp, w1p, b1p, w2p, b2p)

    # TODO(synk): if the surrounding model runs in bf16, accept/emit bf16
    #             end-to-end to halve activation HBM bytes.
    out = out[:M2].reshape(M2 * P, E)[:M]
    return out.reshape(B, T, E)


def _init_params(key, n_embd):
    """Deterministic init mimicking nn.Linear default (uniform +-1/sqrt(fan_in))."""
    h = 4 * n_embd
    k1, k2, k3, k4 = jax.random.split(key, 4)
    lim1 = 1.0 / math.sqrt(n_embd)
    lim2 = 1.0 / math.sqrt(h)
    w1 = jax.random.uniform(k1, (n_embd, h), jnp.float32, -lim1, lim1)
    b1 = jax.random.uniform(k2, (h,), jnp.float32, -lim1, lim1)
    w2 = jax.random.uniform(k3, (h, n_embd), jnp.float32, -lim2, lim2)
    b2 = jax.random.uniform(k4, (n_embd,), jnp.float32, -lim2, lim2)
    return w1, b1, w2, b2


def _reference(x, w1, b1, w2, b2):
    # Exact-erf GELU (nn.GELU() default) in pure f32.
    h = x @ w1 + b1
    h = 0.5 * h * (1.0 + lax.erf(h * _INV_SQRT2))
    return h @ w2 + b2


if __name__ == "__main__":
    key = jax.random.PRNGKey(0)
    kx, kp = jax.random.split(key)

    B, T = 2, 8
    x = jax.random.normal(kx, (B, T, N_EMBD), jnp.float32)
    w1, b1, w2, b2 = _init_params(kp, N_EMBD)

    params = prepare_params(w1, b1, w2, b2)        # one-time weight prep
    ffn = jax.jit(feedforward)

    out = jax.block_until_ready(ffn(x, *params))

    ref = _reference(x, w1, b1, w2, b2)
    assert out.shape == (B, T, N_EMBD)
    # bf16 MXU operands + tanh-approx GELU vs. pure-f32 exact-erf reference:
    # deviation stays in the few-1e-3 range, well inside this tolerance.
    assert jnp.allclose(out, ref, atol=2e-2, rtol=2e-2), \
        float(jnp.max(jnp.abs(out - ref)))

    print("KERNEL_OK")
</pallas_src>

<mosaic_0001>
module attributes {stable_mosaic.version = 11 : i64} {
  func.func @_ffn_kernel(%arg0: i32, %arg1: memref<8x128xf32, #tpu.memory_space<vmem>>, %arg2: memref<128x512xbf16, #tpu.memory_space<vmem>>, %arg3: memref<1x512xf32, #tpu.memory_space<vmem>>, %arg4: memref<512x128xbf16, #tpu.memory_space<vmem>>, %arg5: memref<1x128xf32, #tpu.memory_space<vmem>>, %arg6: memref<8x128xf32, #tpu.memory_space<vmem>>) attributes {dimension_semantics = [#tpu.dimension_semantics<parallel>], iteration_bounds = array<i64: 1>, scalar_prefetch = 0 : i64, scratch_operands = 0 : i64, tpu.core_type = #tpu.core_type<tc>, window_params = [{transform_indices = @transform_0, window_bounds = array<i64: 8, 128>}, {pipeline_mode = #tpu.pipeline_mode<synchronous>, transform_indices = @transform_1, window_bounds = array<i64: 128, 512>}, {pipeline_mode = #tpu.pipeline_mode<synchronous>, transform_indices = @transform_2, window_bounds = array<i64: 1, 512>}, {pipeline_mode = #tpu.pipeline_mode<synchronous>, transform_indices = @transform_3, window_bounds = array<i64: 512, 128>}, {pipeline_mode = #tpu.pipeline_mode<synchronous>, transform_indices = @transform_4, window_bounds = array<i64: 1, 128>}, {transform_indices = @transform_5, window_bounds = array<i64: 8, 128>}]} {
    %c0 = arith.constant 0 : index
    %c0_0 = arith.constant 0 : index
    %0 = vector.load %arg1[%c0, %c0_0] : memref<8x128xf32, #tpu.memory_space<vmem>>, vector<8x128xf32>
    %1 = arith.truncf %0 : vector<8x128xf32> to vector<8x128xbf16>
    %c0_1 = arith.constant 0 : index
    %c0_2 = arith.constant 0 : index
    %2 = vector.load %arg2[%c0_1, %c0_2] : memref<128x512xbf16, #tpu.memory_space<vmem>>, vector<128x512xbf16>
    %cst = arith.constant dense<0.000000e+00> : vector<8x512xf32>
    %3 = tpu.matmul %1, %2, %cst {dimension_numbers = #tpu.dot_dimension_numbers<[1], [0], [0], [1], [0, 0, 1, 1], [], []>} : vector<8x128xbf16>, vector<128x512xbf16>, vector<8x512xf32> -> vector<8x512xf32>
    %c0_3 = arith.constant 0 : index
    %c0_4 = arith.constant 0 : index
    %4 = vector.load %arg3[%c0_3, %c0_4] : memref<1x512xf32, #tpu.memory_space<vmem>>, vector<1x512xf32>
    %5 = vector.broadcast %4 : vector<1x512xf32> to vector<8x512xf32>
    %6 = arith.addf %3, %5 : vector<8x512xf32>
    %7 = arith.truncf %6 : vector<8x512xf32> to vector<8x512xbf16>
    %8 = arith.mulf %7, %7 : vector<8x512xbf16>
    %9 = arith.mulf %8, %7 : vector<8x512xbf16>
    %cst_5 = arith.constant 4.467770e-02 : bf16
    %10 = vector.broadcast %cst_5 : bf16 to vector<8x512xbf16>
    %11 = arith.mulf %10, %9 : vector<8x512xbf16>
    %12 = arith.addf %7, %11 : vector<8x512xbf16>
    %cst_6 = arith.constant 7.968750e-01 : bf16
    %13 = vector.broadcast %cst_6 : bf16 to vector<8x512xbf16>
    %14 = arith.mulf %13, %12 : vector<8x512xbf16>
    %cst_7 = arith.constant 5.000000e-01 : bf16
    %15 = vector.broadcast %cst_7 : bf16 to vector<8x512xbf16>
    %16 = arith.mulf %15, %7 : vector<8x512xbf16>
    %17 = math.tanh %14 : vector<8x512xbf16>
    %cst_8 = arith.constant 1.000000e+00 : bf16
    %18 = vector.broadcast %cst_8 : bf16 to vector<8x512xbf16>
    %19 = arith.addf %18, %17 : vector<8x512xbf16>
    %20 = arith.mulf %16, %19 : vector<8x512xbf16>
    %c0_9 = arith.constant 0 : index
    %c0_10 = arith.constant 0 : index
    %21 = vector.load %arg4[%c0_9, %c0_10] : memref<512x128xbf16, #tpu.memory_space<vmem>>, vector<512x128xbf16>
    %cst_11 = arith.constant dense<0.000000e+00> : vector<8x128xf32>
    %22 = tpu.matmul %20, %21, %cst_11 {dimension_numbers = #tpu.dot_dimension_numbers<[1], [0], [0], [1], [0, 0, 1, 1], [], []>} : vector<8x512xbf16>, vector<512x128xbf16>, vector<8x128xf32> -> vector<8x128xf32>
    %c0_12 = arith.constant 0 : index
    %c0_13 = arith.constant 0 : index
    %23 = vector.load %arg5[%c0_12, %c0_13] : memref<1x128xf32, #tpu.memory_space<vmem>>, vector<1x128xf32>
    %24 = vector.broadcast %23 : vector<1x128xf32> to vector<8x128xf32>
    %25 = arith.addf %22, %24 : vector<8x128xf32>
    %c0_14 = arith.constant 0 : index
    %c0_15 = arith.constant 0 : index
    %26 = vector.load %arg6[%c0_14, %c0_15] : memref<8x128xf32, #tpu.memory_space<vmem>>, vector<8x128xf32>
    tpu.vector_store %arg6[%c0_14, %c0_15], %25 {strides = array<i32>} : memref<8x128xf32, #tpu.memory_space<vmem>>, vector<8x128xf32>,
    return
  }
  func.func @transform_0(%arg0: i32) -> (i32, i32) {
    %c0_i32 = arith.constant 0 : i32
    %c0_i32_0 = arith.constant 0 : i32
    return %arg0, %c0_i32 : i32, i32
  }
  func.func @transform_1(%arg0: i32) -> (i32, i32) {
    %c0_i32 = arith.constant 0 : i32
    %c0_i32_0 = arith.constant 0 : i32
    %c0_i32_1 = arith.constant 0 : i32
    return %c0_i32, %c0_i32_0 : i32, i32
  }
  func.func @transform_2(%arg0: i32) -> (i32, i32) {
    %c0_i32 = arith.constant 0 : i32
    %c0_i32_0 = arith.constant 0 : i32
    %c0_i32_1 = arith.constant 0 : i32
    return %c0_i32, %c0_i32_0 : i32, i32
  }
  func.func @transform_3(%arg0: i32) -> (i32, i32) {
    %c0_i32 = arith.constant 0 : i32
    %c0_i32_0 = arith.constant 0 : i32
    %c0_i32_1 = arith.constant 0 : i32
    return %c0_i32, %c0_i32_0 : i32, i32
  }
  func.func @transform_4(%arg0: i32) -> (i32, i32) {
    %c0_i32 = arith.constant 0 : i32
    %c0_i32_0 = arith.constant 0 : i32
    %c0_i32_1 = arith.constant 0 : i32
    return %c0_i32, %c0_i32_0 : i32, i32
  }
  func.func @transform_5(%arg0: i32) -> (i32, i32) {
    %c0_i32 = arith.constant 0 : i32
    %c0_i32_0 = arith.constant 0 : i32
    return %arg0, %c0_i32 : i32, i32
  }
}

</mosaic_0001>

<llo_original>
// kernel: feedforward.1
$region0: #{feedforward.1}
  #allocation0 [shape = 'u32[]', space=smem, size = 0x4, offset = 0x4, fixed_abs, tag = 'smem constant byte address 0x4 - core index']
  #allocation1 [shape = 'u32[144,128]{1,0:T(1,128)}', space=vmem, size = 0x12000, scoped, tag = 'internal scratch']
  %s0 = inlined_call_operand.hbm [shape: f32[8,128], index: 0, kind: input, shape index: {}]
  %s1 = inlined_call_operand.hbm [shape: bf16[128,512], index: 1, kind: input, shape index: {}]
  %s2 = inlined_call_operand.hbm [shape: f32[1,512], index: 2, kind: input, shape index: {}]
  %s3 = inlined_call_operand.hbm [shape: bf16[512,128], index: 3, kind: input, shape index: {}]
  %s4 = inlined_call_operand.hbm [shape: f32[1,128], index: 4, kind: input, shape index: {}]
  %s5 = inlined_call_operand.hbm [shape: f32[8,128], index: 5, kind: output, shape index: {}]
  %s6 = sld [smem:[#allocation0]]
  $region50: #{feedforward.1} parent=0
    _
  %s8 = ssub.s32 1, %s6
  %s9 = scalar_select 0, %s8, %s6
  $region1: #{feedforward.1} parent=0
    #allocation2 [shape = 'u8[4096]{0}', space=vmem, size = 0x1000, scoped, tag = 'input window, operand 0, single buffered']
    #allocation3 [shape = 's32[1]{0}', space=sflag, size = 0x4, scoped, tag = 'scoped memory for feedforward.1']
    #allocation4 [shape = 's32[1]{0}', space=sflag, size = 0x4, scoped, tag = 'scoped memory for feedforward.1']
    #allocation5 [shape = 'u8[131072]{0}', space=vmem, size = 0x20000, scoped, tag = 'input window, operand 1, single buffered']
    #allocation6 [shape = 's32[1]{0}', space=sflag, size = 0x4, scoped, tag = 'scoped memory for feedforward.1']
    #allocation7 [shape = 'u8[2048]{0}', space=vmem, size = 0x800, scoped, tag = 'input window, operand 2, single buffered']
    #allocation8 [shape = 'u8[131072]{0}', space=vmem, size = 0x20000, scoped, tag = 'input window, operand 3, single buffered']
    #allocation9 [shape = 's32[1]{0}', space=sflag, size = 0x4, scoped, tag = 'scoped memory for feedforward.1']
    #allocation10 [shape = 'u8[512]{0}', space=vmem, size = 0x400, scoped, tag = 'input window, operand 4, single buffered']
    #allocation11 [shape = 'u8[4096]{0}', space=vmem, size = 0x1000, scoped, tag = 'output window, operand 0, single buffered']
    %10 = vsyncpa [#allocation3], 0
    %11 = vsyncpa [#allocation6], 0
    %12 = vsyncpa [#allocation9], 0
    %13 = vsyncpa [#allocation4], 0
    // Predicated region
    $region2: #{feedforward.1} parent=1 // pred_check
      _
    $region3: #{feedforward.1} parent=1 // pred_check_branch
      %15 = sbr.rel (0) target = $region5
    $region4: #{feedforward.1} parent=1 // pred_region
      %s17 = ssub.s32 128, 128
      %18 = vsyncadd [#allocation3], %s17
      %s20 = sshll.u32 [#allocation2], 4
      %s21 = int_to_ptr.vmem [resolvable:$true] %s20
      %23 = dma.hbm_to_vmem [thread:$0]  %s0, 128, %s21, [#allocation3]
    $region5: #{feedforward.1} parent=1 // pred_fallthru
      _
    // Predicated region
    $region6: #{feedforward.1} parent=1 // pred_check
      _
    $region7: #{feedforward.1} parent=1 // pred_check_branch
      %25 = sbr.rel (0) target = $region9
    $region8: #{feedforward.1} parent=1 // pred_region
      %s27 = ssub.s32 4096, 4096
      %28 = vsyncadd [#allocation6], %s27
      %s29 = sshll.u32 [#allocation5], 4
      %s30 = int_to_ptr.vmem [resolvable:$true] %s29
      %35 = dma.hbm_to_vmem [thread:$0]  %s1, 4096, %s30, [#allocation6], 256, 256, 16
    $region9: #{feedforward.1} parent=1 // pred_fallthru
      _
    // Predicated region
    $region10: #{feedforward.1} parent=1 // pred_check
      _
    $region11: #{feedforward.1} parent=1 // pred_check_branch
      %37 = sbr.rel (0) target = $region13
    $region12: #{feedforward.1} parent=1 // pred_region
      %s39 = ssub.s32 64, 64
      %40 = vsyncadd [#allocation6], %s39
      %s42 = sshll.u32 [#allocation7], 4
      %s43 = int_to_ptr.vmem [resolvable:$true] %s42
      %45 = dma.hbm_to_vmem [thread:$0]  %s2, 64, %s43, [#allocation6]
    $region13: #{feedforward.1} parent=1 // pred_fallthru
      _
    // Predicated region
    $region14: #{feedforward.1} parent=1 // pred_check
      _
    $region15: #{feedforward.1} parent=1 // pred_check_branch
      %47 = sbr.rel (0) target = $region17
    $region16: #{feedforward.1} parent=1 // pred_region
      %s49 = ssub.s32 4096, 4096
      %50 = vsyncadd [#allocation9], %s49
      %s51 = sshll.u32 [#allocation8], 4
      %s52 = int_to_ptr.vmem [resolvable:$true] %s51
      %57 = dma.hbm_to_vmem [thread:$0]  %s3, 4096, %s52, [#allocation9], 64, 64, 4
    $region17: #{feedforward.1} parent=1 // pred_fallthru
      _
    // Predicated region
    $region18: #{feedforward.1} parent=1 // pred_check
      _
    $region19: #{feedforward.1} parent=1 // pred_check_branch
      %59 = sbr.rel (0) target = $region21
    $region20: #{feedforward.1} parent=1 // pred_region
      %s61 = ssub.s32 16, 16
      %62 = vsyncadd [#allocation9], %s61
      %s64 = sshll.u32 [#allocation10], 4
      %s65 = int_to_ptr.vmem [resolvable:$true] %s64
      %67 = dma.hbm_to_vmem [thread:$0]  %s4, 16, %s65, [#allocation9]
    $region21: #{feedforward.1} parent=1 // pred_fallthru
      _
    // Predicated region
    $region22: #{feedforward.1} parent=1 // pred_check
      _
    $region23: #{feedforward.1} parent=1 // pred_check_branch
      %69 = sbr.rel (0) target = $region25
    $region24: #{feedforward.1} parent=1 // pred_region
      %70 = dma.done [#allocation3], 128
    $region25: #{feedforward.1} parent=1 // pred_fallthru
      _
    // Predicated region
    $region26: #{feedforward.1} parent=1 // pred_check
      _
    $region27: #{feedforward.1} parent=1 // pred_check_branch
      %72 = sbr.rel (0) target = $region29
    $region28: #{feedforward.1} parent=1 // pred_region
      %73 = dma.done [#allocation6], 4096
    $region29: #{feedforward.1} parent=1 // pred_fallthru
      _
    // Predicated region
    $region30: #{feedforward.1} parent=1 // pred_check
      _
    $region31: #{feedforward.1} parent=1 // pred_check_branch
      %75 = sbr.rel (0) target = $region33
    $region32: #{feedforward.1} parent=1 // pred_region
      %76 = dma.done [#allocation6], 64
    $region33: #{feedforward.1} parent=1 // pred_fallthru
      _
    // Predicated region
    $region34: #{feedforward.1} parent=1 // pred_check
      _
    $region35: #{feedforward.1} parent=1 // pred_check_branch
      %78 = sbr.rel (0) target = $region37
    $region36: #{feedforward.1} parent=1 // pred_region
      %79 = dma.done [#allocation9], 4096
    $region37: #{feedforward.1} parent=1 // pred_fallthru
      _
    // Predicated region
    $region38: #{feedforward.1} parent=1 // pred_check
      _
    $region39: #{feedforward.1} parent=1 // pred_check_branch
      %81 = sbr.rel (0) target = $region41
    $region40: #{feedforward.1} parent=1 // pred_region
      %82 = dma.done [#allocation9], 16
    $region41: #{feedforward.1} parent=1 // pred_fallthru
      _
    %v88 = vld [vmem:[#allocation2] sm:$0xff]
    %v89 = vpack.c.bf16 %v88, %v88
    %v90 = vld [vmem:[#allocation5] sm:$0xff]
    %v91 = vld [vmem:[#allocation5 + $0x8] sm:$0xff]
    %v92 = vld [vmem:[#allocation5 + $0x10] sm:$0xff]
    %v93 = vld [vmem:[#allocation5 + $0x18] sm:$0xff]
    %v94 = vld [vmem:[#allocation5 + $0x20] sm:$0xff]
    %v95 = vld [vmem:[#allocation5 + $0x28] sm:$0xff]
    %v96 = vld [vmem:[#allocation5 + $0x30] sm:$0xff]
    %v97 = vld [vmem:[#allocation5 + $0x38] sm:$0xff]
    %v98 = vld [vmem:[#allocation5 + $0x40] sm:$0xff]
    %v99 = vld [vmem:[#allocation5 + $0x48] sm:$0xff]
    %v100 = vld [vmem:[#allocation5 + $0x50] sm:$0xff]
    %v101 = vld [vmem:[#allocation5 + $0x58] sm:$0xff]
    %v102 = vld [vmem:[#allocation5 + $0x60] sm:$0xff]
    %v103 = vld [vmem:[#allocation5 + $0x68] sm:$0xff]
    %v104 = vld [vmem:[#allocation5 + $0x70] sm:$0xff]
    %v105 = vld [vmem:[#allocation5 + $0x78] sm:$0xff]
    %v106 = vld [vmem:[#allocation5 + $0x80] sm:$0xff]
    %v107 = vld [vmem:[#allocation5 + $0x88] sm:$0xff]
    %v108 = vld [vmem:[#allocation5 + $0x90] sm:$0xff]
    %v109 = vld [vmem:[#allocation5 + $0x98] sm:$0xff]
    %v110 = vld [vmem:[#allocation5 + $0xa0] sm:$0xff]
    %v111 = vld [vmem:[#allocation5 + $0xa8] sm:$0xff]
    %v112 = vld [vmem:[#allocation5 + $0xb0] sm:$0xff]
    %v113 = vld [vmem:[#allocation5 + $0xb8] sm:$0xff]
    %v114 = vld [vmem:[#allocation5 + $0xc0] sm:$0xff]
    %v115 = vld [vmem:[#allocation5 + $0xc8] sm:$0xff]
    %v116 = vld [vmem:[#allocation5 + $0xd0] sm:$0xff]
    %v117 = vld [vmem:[#allocation5 + $0xd8] sm:$0xff]
    %v118 = vld [vmem:[#allocation5 + $0xe0] sm:$0xff]
    %v119 = vld [vmem:[#allocation5 + $0xe8] sm:$0xff]
    %v120 = vld [vmem:[#allocation5 + $0xf0] sm:$0xff]
    %v121 = vld [vmem:[#allocation5 + $0xf8] sm:$0xff]
    %v122 = vld [vmem:[#allocation7] sm:$0xf]
    %v124 = vlaneseq
    %v125 = vshrl.u32 %v124, 7
    %v126 = vsub.s32 0, %v125
    %v127 = vrot.slane %v122, %v126
    %v128 = vlaneseq
    %v129 = vshrl.u32 %v128, 7
    %v130 = vsub.s32 1, %v129
    %v131 = vrot.slane %v122, %v130
    %v132 = vlaneseq
    %v133 = vshrl.u32 %v132, 7
    %v134 = vsub.s32 2, %v133
    %v135 = vrot.slane %v122, %v134
    %v136 = vlaneseq
    %v137 = vshrl.u32 %v136, 7
    %v138 = vsub.s32 3, %v137
    %v139 = vrot.slane %v122, %v138
    %v176 = vunpack.c.l.b16 %v90
    %v177 = vunpack.c.h.b16 %v90
    %v178 = vunpack.c.l.b16 %v91
    %v179 = vunpack.c.h.b16 %v91
    %v180 = vunpack.c.l.b16 %v92
    %v181 = vunpack.c.h.b16 %v92
    %v182 = vunpack.c.l.b16 %v93
    %v183 = vunpack.c.h.b16 %v93
    %v184 = vunpack.c.l.b16 %v94
    %v185 = vunpack.c.h.b16 %v94
    %v186 = vunpack.c.l.b16 %v95
    %v187 = vunpack.c.h.b16 %v95
    %v188 = vunpack.c.l.b16 %v96
    %v189 = vunpack.c.h.b16 %v96
    %v190 = vunpack.c.l.b16 %v97
    %v191 = vunpack.c.h.b16 %v97
    %v192 = vunpack.c.l.b16 %v98
    %v193 = vunpack.c.h.b16 %v98
    %v194 = vunpack.c.l.b16 %v99
    %v195 = vunpack.c.h.b16 %v99
    %v196 = vunpack.c.l.b16 %v100
    %v197 = vunpack.c.h.b16 %v100
    %v198 = vunpack.c.l.b16 %v101
    %v199 = vunpack.c.h.b16 %v101
    %v200 = vunpack.c.l.b16 %v102
    %v201 = vunpack.c.h.b16 %v102
    %v202 = vunpack.c.l.b16 %v103
    %v203 = vunpack.c.h.b16 %v103
    %v204 = vunpack.c.l.b16 %v104
    %v205 = vunpack.c.h.b16 %v104
    %v206 = vunpack.c.l.b16 %v105
    %v207 = vunpack.c.h.b16 %v105
    %v208 = vunpack.c.l.b16 %v106
    %v209 = vunpack.c.h.b16 %v106
    %v210 = vunpack.c.l.b16 %v107
    %v211 = vunpack.c.h.b16 %v107
    %v212 = vunpack.c.l.b16 %v108
    %v213 = vunpack.c.h.b16 %v108
    %v214 = vunpack.c.l.b16 %v109
    %v215 = vunpack.c.h.b16 %v109
    %v216 = vunpack.c.l.b16 %v110
    %v217 = vunpack.c.h.b16 %v110
    %v218 = vunpack.c.l.b16 %v111
    %v219 = vunpack.c.h.b16 %v111
    %v220 = vunpack.c.l.b16 %v112
    %v221 = vunpack.c.h.b16 %v112
    %v222 = vunpack.c.l.b16 %v113
    %v223 = vunpack.c.h.b16 %v113
    %v224 = vunpack.c.l.b16 %v114
    %v225 = vunpack.c.h.b16 %v114
    %v226 = vunpack.c.l.b16 %v115
    %v227 = vunpack.c.h.b16 %v115
    %v228 = vunpack.c.l.b16 %v116
    %v229 = vunpack.c.h.b16 %v116
    %v230 = vunpack.c.l.b16 %v117
    %v231 = vunpack.c.h.b16 %v117
    %v232 = vunpack.c.l.b16 %v118
    %v233 = vunpack.c.h.b16 %v118
    %v234 = vunpack.c.l.b16 %v119
    %v235 = vunpack.c.h.b16 %v119
    %v236 = vunpack.c.l.b16 %v120
    %v237 = vunpack.c.h.b16 %v120
    %v238 = vunpack.c.l.b16 %v121
    %v239 = vunpack.c.h.b16 %v121
    %v240 = vpack.c.b16 %v180, %v176
    %v241 = vpack.c.b16 %v181, %v177
    %v242 = vpack.c.b16 %v182, %v178
    %v243 = vpack.c.b16 %v183, %v179
    %v244 = vpack.c.b16 %v188, %v184
    %v245 = vpack.c.b16 %v189, %v185
    %v246 = vpack.c.b16 %v190, %v186
    %v247 = vpack.c.b16 %v191, %v187
    %v248 = vpack.c.b16 %v196, %v192
    %v249 = vpack.c.b16 %v197, %v193
    %v250 = vpack.c.b16 %v198, %v194
    %v251 = vpack.c.b16 %v199, %v195
    %v252 = vpack.c.b16 %v204, %v200
    %v253 = vpack.c.b16 %v205, %v201
    %v254 = vpack.c.b16 %v206, %v202
    %v255 = vpack.c.b16 %v207, %v203
    %v256 = vpack.c.b16 %v212, %v208
    %v257 = vpack.c.b16 %v213, %v209
    %v258 = vpack.c.b16 %v214, %v210
    %v259 = vpack.c.b16 %v215, %v211
    %v260 = vpack.c.b16 %v220, %v216
    %v261 = vpack.c.b16 %v221, %v217
    %v262 = vpack.c.b16 %v222, %v218
    %v263 = vpack.c.b16 %v223, %v219
    %v264 = vpack.c.b16 %v228, %v224
    %v265 = vpack.c.b16 %v229, %v225
    %v266 = vpack.c.b16 %v230, %v226
    %v267 = vpack.c.b16 %v231, %v227
    %v268 = vpack.c.b16 %v236, %v232
    %v269 = vpack.c.b16 %v237, %v233
    %v270 = vpack.c.b16 %v238, %v234
    %v271 = vpack.c.b16 %v239, %v235
    %304 = vmatprep.subr.bf16.mxu0 %v241
    %305 = vmatpush1.bf16.msra.mxu0 %v240
    %306 = vmatprep.subr.bf16.mxu0 %v245
    %307 = vmatpush1.bf16.msra.mxu0 %v244
    %308 = vmatprep.subr.bf16.mxu0 %v249
    %309 = vmatpush1.bf16.msra.mxu0 %v248
    %310 = vmatprep.subr.bf16.mxu0 %v253
    %311 = vmatpush1.bf16.msra.mxu0 %v252
    %312 = vmatprep.subr.bf16.mxu0 %v257
    %313 = vmatpush1.bf16.msra.mxu0 %v256
    %314 = vmatprep.subr.bf16.mxu0 %v261
    %315 = vmatpush1.bf16.msra.mxu0 %v260
    %316 = vmatprep.subr.bf16.mxu0 %v265
    %317 = vmatpush1.bf16.msra.mxu0 %v264
    %318 = vmatprep.subr.bf16.mxu0 %v269
    %319 = vmatpush1.bf16.msra.mxu0 %v268
    %320 = vmatprep.subr.bf16.mxu0 0
    %321 = vmatpush1.bf16.msra.mxu0 0
    %322 = vmatprep.subr.bf16.mxu0 0
    %323 = vmatpush1.bf16.msra.mxu0 0
    %324 = vmatprep.subr.bf16.mxu0 0
    %325 = vmatpush1.bf16.msra.mxu0 0
    %326 = vmatprep.subr.bf16.mxu0 0
    %327 = vmatpush1.bf16.msra.mxu0 0
    %328 = vmatprep.subr.bf16.mxu0 0
    %329 = vmatpush1.bf16.msra.mxu0 0
    %330 = vmatprep.subr.bf16.mxu0 0
    %331 = vmatpush1.bf16.msra.mxu0 0
    %332 = vmatprep.subr.bf16.mxu0 0
    %333 = vmatpush1.bf16.msra.mxu0 0
    %334 = vmatprep.subr.bf16.mxu0 0
    %335 = vmatpush1.bf16.msra.mxu0 0
    %336 = vmatprep.mubr.bf16.mxu0 0
    %337 = vmatmul.mubr.bf16.gmra.mrb[0].mxu0 %v89
    %v338 = vpop.f32.mrb[0].mxu0
    %v339 = vadd.f32 %v127, %v338
    %v340 = vpop.f32.mrb[0].mxu0
    %v341 = vadd.f32 %v131, %v340
    %v342 = vpop.f32.mrb[0].mxu0
    %v343 = vpop.f32.mrb[0].mxu0
    %344 = vdwg.mxu0
    %345 = vmatprep.subr.bf16.mxu0 %v243
    %346 = vmatpush1.bf16.msra.mxu0 %v242
    %347 = vmatprep.subr.bf16.mxu0 %v247
    %348 = vmatpush1.bf16.msra.mxu0 %v246
    %349 = vmatprep.subr.bf16.mxu0 %v251
    %350 = vmatpush1.bf16.msra.mxu0 %v250
    %351 = vmatprep.subr.bf16.mxu0 %v255
    %352 = vmatpush1.bf16.msra.mxu0 %v254
    %353 = vmatprep.subr.bf16.mxu0 %v259
    %354 = vmatpush1.bf16.msra.mxu0 %v258
    %355 = vmatprep.subr.bf16.mxu0 %v263
    %356 = vmatpush1.bf16.msra.mxu0 %v262
    %357 = vmatprep.subr.bf16.mxu0 %v267
    %358 = vmatpush1.bf16.msra.mxu0 %v266
    %359 = vmatprep.subr.bf16.mxu0 %v271
    %360 = vmatpush1.bf16.msra.mxu0 %v270
    %361 = vmatprep.subr.bf16.mxu0 0
    %362 = vmatpush1.bf16.msra.mxu0 0
    %363 = vmatprep.subr.bf16.mxu0 0
    %364 = vmatpush1.bf16.msra.mxu0 0
    %365 = vmatprep.subr.bf16.mxu0 0
    %366 = vmatpush1.bf16.msra.mxu0 0
    %367 = vmatprep.subr.bf16.mxu0 0
    %368 = vmatpush1.bf16.msra.mxu0 0
    %369 = vmatprep.subr.bf16.mxu0 0
    %370 = vmatpush1.bf16.msra.mxu0 0
    %371 = vmatprep.subr.bf16.mxu0 0
    %372 = vmatpush1.bf16.msra.mxu0 0
    %373 = vmatprep.subr.bf16.mxu0 0
    %374 = vmatpush1.bf16.msra.mxu0 0
    %375 = vmatprep.subr.bf16.mxu0 0
    %376 = vmatpush1.bf16.msra.mxu0 0
    %377 = vmatprep.mubr.bf16.mxu0 0
    %378 = vmatmul.mubr.bf16.gmra.mrb[0].mxu0 %v89
    %v379 = vpop.f32.mrb[0].mxu0
    %v380 = vadd.f32 %v135, %v379
    %v381 = vpop.f32.mrb[0].mxu0
    %v382 = vadd.f32 %v139, %v381
    %v383 = vpop.f32.mrb[0].mxu0
    %v384 = vpop.f32.mrb[0].mxu0
    %385 = vdwg.mxu0
    %v386 = vpack.c.bf16 %v339, %v339
    %v387 = vpack.c.bf16 %v341, %v341
    %v388 = vpack.c.bf16 %v380, %v380
    %v389 = vpack.c.bf16 %v382, %v382
    %v390 = vmul.bf16 %v386, %v386
    %v391 = vmul.bf16 %v387, %v387
    %v392 = vmul.bf16 %v388, %v388
    %v393 = vmul.bf16 %v389, %v389
    %v394 = vmul.bf16 %v390, %v386
    %v395 = vmul.bf16 %v391, %v387
    %v396 = vmul.bf16 %v392, %v388
    %v397 = vmul.bf16 %v393, %v389
    %v398 = vmul.bf16 %v394, 1027030327
    %v399 = vmul.bf16 %v395, 1027030327
    %v400 = vmul.bf16 %v396, 1027030327
    %v401 = vmul.bf16 %v397, 1027030327
    %v402 = vadd.bf16 %v386, %v398
    %v403 = vadd.bf16 %v387, %v399
    %v404 = vadd.bf16 %v388, %v400
    %v405 = vadd.bf16 %v389, %v401
    %v406 = vmul.bf16 %v402, 1061961548
    %v407 = vmul.bf16 %v403, 1061961548
    %v408 = vmul.bf16 %v404, 1061961548
    %v409 = vmul.bf16 %v405, 1061961548
    %v410 = vmul.bf16 %v386, 1056980736
    %v411 = vmul.bf16 %v387, 1056980736
    %v412 = vmul.bf16 %v388, 1056980736
    %v413 = vmul.bf16 %v389, 1056980736
    %v414 = vtanh.bf16.pop %v406
    %v415 = vtanh.bf16.pop %v407
    %v416 = vtanh.bf16.pop %v408
    %v417 = vtanh.bf16.pop %v409
    %v418 = vadd.bf16 %v414, 1065369472
    %v419 = vadd.bf16 %v415, 1065369472
    %v420 = vadd.bf16 %v416, 1065369472
    %v421 = vadd.bf16 %v417, 1065369472
    %v422 = vmul.bf16 %v410, %v418
    %v423 = vmul.bf16 %v411, %v419
    %v424 = vmul.bf16 %v412, %v420
    %v425 = vmul.bf16 %v413, %v421
    %v426 = vld [vmem:[#allocation8] sm:$0xf]
    %v427 = vld [vmem:[#allocation8 + $0x4] sm:$0xf]
    %v428 = vld [vmem:[#allocation8 + $0x8] sm:$0xf]
    %v429 = vld [vmem:[#allocation8 + $0xc] sm:$0xf]
    %v430 = vld [vmem:[#allocation8 + $0x10] sm:$0xf]
    %v431 = vld [vmem:[#allocation8 + $0x14] sm:$0xf]
    %v432 = vld [vmem:[#allocation8 + $0x18] sm:$0xf]
    %v433 = vld [vmem:[#allocation8 + $0x1c] sm:$0xf]
    %v434 = vld [vmem:[#allocation8 + $0x20] sm:$0xf]
    %v435 = vld [vmem:[#allocation8 + $0x24] sm:$0xf]
    %v436 = vld [vmem:[#allocation8 + $0x28] sm:$0xf]
    %v437 = vld [vmem:[#allocation8 + $0x2c] sm:$0xf]
    %v438 = vld [vmem:[#allocation8 + $0x30] sm:$0xf]
    %v439 = vld [vmem:[#allocation8 + $0x34] sm:$0xf]
    %v440 = vld [vmem:[#allocation8 + $0x38] sm:$0xf]
    %v441 = vld [vmem:[#allocation8 + $0x3c] sm:$0xf]
    %v442 = vld [vmem:[#allocation8 + $0x40] sm:$0xf]
    %v443 = vld [vmem:[#allocation8 + $0x44] sm:$0xf]
    %v444 = vld [vmem:[#allocation8 + $0x48] sm:$0xf]
    %v445 = vld [vmem:[#allocation8 + $0x4c] sm:$0xf]
    %v446 = vld [vmem:[#allocation8 + $0x50] sm:$0xf]
    %v447 = vld [vmem:[#allocation8 + $0x54] sm:$0xf]
    %v448 = vld [vmem:[#allocation8 + $0x58] sm:$0xf]
    %v449 = vld [vmem:[#allocation8 + $0x5c] sm:$0xf]
    %v450 = vld [vmem:[#allocation8 + $0x60] sm:$0xf]
    %v451 = vld [vmem:[#allocation8 + $0x64] sm:$0xf]
    %v452 = vld [vmem:[#allocation8 + $0x68] sm:$0xf]
    %v453 = vld [vmem:[#allocation8 + $0x6c] sm:$0xf]
    %v454 = vld [vmem:[#allocation8 + $0x70] sm:$0xf]
    %v455 = vld [vmem:[#allocation8 + $0x74] sm:$0xf]
    %v456 = vld [vmem:[#allocation8 + $0x78] sm:$0xf]
    %v457 = vld [vmem:[#allocation8 + $0x7c] sm:$0xf]
    %v458 = vld [vmem:[#allocation8 + $0x80] sm:$0xf]
    %v459 = vld [vmem:[#allocation8 + $0x84] sm:$0xf]
    %v460 = vld [vmem:[#allocation8 + $0x88] sm:$0xf]
    %v461 = vld [vmem:[#allocation8 + $0x8c] sm:$0xf]
    %v462 = vld [vmem:[#allocation8 + $0x90] sm:$0xf]
    %v463 = vld [vmem:[#allocation8 + $0x94] sm:$0xf]
    %v464 = vld [vmem:[#allocation8 + $0x98] sm:$0xf]
    %v465 = vld [vmem:[#allocation8 + $0x9c] sm:$0xf]
    %v466 = vld [vmem:[#allocation8 + $0xa0] sm:$0xf]
    %v467 = vld [vmem:[#allocation8 + $0xa4] sm:$0xf]
    %v468 = vld [vmem:[#allocation8 + $0xa8] sm:$0xf]
    %v469 = vld [vmem:[#allocation8 + $0xac] sm:$0xf]
    %v470 = vld [vmem:[#allocation8 + $0xb0] sm:$0xf]
    %v471 = vld [vmem:[#allocation8 + $0xb4] sm:$0xf]
    %v472 = vld [vmem:[#allocation8 + $0xb8] sm:$0xf]
    %v473 = vld [vmem:[#allocation8 + $0xbc] sm:$0xf]
    %v474 = vld [vmem:[#allocation8 + $0xc0] sm:$0xf]
    %v475 = vld [vmem:[#allocation8 + $0xc4] sm:$0xf]
    %v476 = vld [vmem:[#allocation8 + $0xc8] sm:$0xf]
    %v477 = vld [vmem:[#allocation8 + $0xcc] sm:$0xf]
    %v478 = vld [vmem:[#allocation8 + $0xd0] sm:$0xf]
    %v479 = vld [vmem:[#allocation8 + $0xd4] sm:$0xf]
    %v480 = vld [vmem:[#allocation8 + $0xd8] sm:$0xf]
    %v481 = vld [vmem:[#allocation8 + $0xdc] sm:$0xf]
    %v482 = vld [vmem:[#allocation8 + $0xe0] sm:$0xf]
    %v483 = vld [vmem:[#allocation8 + $0xe4] sm:$0xf]
    %v484 = vld [vmem:[#allocation8 + $0xe8] sm:$0xf]
    %v485 = vld [vmem:[#allocation8 + $0xec] sm:$0xf]
    %v486 = vld [vmem:[#allocation8 + $0xf0] sm:$0xf]
    %v487 = vld [vmem:[#allocation8 + $0xf4] sm:$0xf]
    %v488 = vld [vmem:[#allocation8 + $0xf8] sm:$0xf]
    %v489 = vld [vmem:[#allocation8 + $0xfc] sm:$0xf]
    %v490 = vld [vmem:[#allocation10] sm:$0x1]
    %v492 = vlaneseq
    %v493 = vshrl.u32 %v492, 7
    %v494 = vsub.s32 0, %v493
    %v495 = vrot.slane %v490, %v494
    %v561 = vunpack.c.l.b16 %v426
    %v562 = vunpack.c.l.b16 %v427
    %v563 = vunpack.c.l.b16 %v428
    %v564 = vunpack.c.l.b16 %v429
    %v565 = vunpack.c.l.b16 %v430
    %v566 = vunpack.c.l.b16 %v431
    %v567 = vunpack.c.l.b16 %v432
    %v568 = vunpack.c.l.b16 %v433
    %v569 = vunpack.c.l.b16 %v434
    %v570 = vunpack.c.l.b16 %v435
    %v571 = vunpack.c.l.b16 %v436
    %v572 = vunpack.c.l.b16 %v437
    %v573 = vunpack.c.l.b16 %v438
    %v574 = vunpack.c.l.b16 %v439
    %v575 = vunpack.c.l.b16 %v440
    %v576 = vunpack.c.l.b16 %v441
    %v577 = vunpack.c.l.b16 %v442
    %v578 = vunpack.c.l.b16 %v443
    %v579 = vunpack.c.l.b16 %v444
    %v580 = vunpack.c.l.b16 %v445
    %v581 = vunpack.c.l.b16 %v446
    %v582 = vunpack.c.l.b16 %v447
    %v583 = vunpack.c.l.b16 %v448
    %v584 = vunpack.c.l.b16 %v449
    %v585 = vunpack.c.l.b16 %v450
    %v586 = vunpack.c.l.b16 %v451
    %v587 = vunpack.c.l.b16 %v452
    %v588 = vunpack.c.l.b16 %v453
    %v589 = vunpack.c.l.b16 %v454
    %v590 = vunpack.c.l.b16 %v455
    %v591 = vunpack.c.l.b16 %v456
    %v592 = vunpack.c.l.b16 %v457
    %v593 = vunpack.c.l.b16 %v458
    %v594 = vunpack.c.l.b16 %v459
    %v595 = vunpack.c.l.b16 %v460
    %v596 = vunpack.c.l.b16 %v461
    %v597 = vunpack.c.l.b16 %v462
    %v598 = vunpack.c.l.b16 %v463
    %v599 = vunpack.c.l.b16 %v464
    %v600 = vunpack.c.l.b16 %v465
    %v601 = vunpack.c.l.b16 %v466
    %v602 = vunpack.c.l.b16 %v467
    %v603 = vunpack.c.l.b16 %v468
    %v604 = vunpack.c.l.b16 %v469
    %v605 = vunpack.c.l.b16 %v470
    %v606 = vunpack.c.l.b16 %v471
    %v607 = vunpack.c.l.b16 %v472
    %v608 = vunpack.c.l.b16 %v473
    %v609 = vunpack.c.l.b16 %v474
    %v610 = vunpack.c.l.b16 %v475
    %v611 = vunpack.c.l.b16 %v476
    %v612 = vunpack.c.l.b16 %v477
    %v613 = vunpack.c.l.b16 %v478
    %v614 = vunpack.c.l.b16 %v479
    %v615 = vunpack.c.l.b16 %v480
    %v616 = vunpack.c.l.b16 %v481
    %v617 = vunpack.c.l.b16 %v482
    %v618 = vunpack.c.l.b16 %v483
    %v619 = vunpack.c.l.b16 %v484
    %v620 = vunpack.c.l.b16 %v485
    %v621 = vunpack.c.l.b16 %v486
    %v622 = vunpack.c.l.b16 %v487
    %v623 = vunpack.c.l.b16 %v488
    %v624 = vunpack.c.l.b16 %v489
    %v625 = vpack.c.b16 %v562, %v561
    %v626 = vpack.c.b16 %v564, %v563
    %v627 = vpack.c.b16 %v566, %v565
    %v628 = vpack.c.b16 %v568, %v567
    %v629 = vpack.c.b16 %v570, %v569
    %v630 = vpack.c.b16 %v572, %v571
    %v631 = vpack.c.b16 %v574, %v573
    %v632 = vpack.c.b16 %v576, %v575
    %v633 = vpack.c.b16 %v578, %v577
    %v634 = vpack.c.b16 %v580, %v579
    %v635 = vpack.c.b16 %v582, %v581
    %v636 = vpack.c.b16 %v584, %v583
    %v637 = vpack.c.b16 %v586, %v585
    %v638 = vpack.c.b16 %v588, %v587
    %v639 = vpack.c.b16 %v590, %v589
    %v640 = vpack.c.b16 %v592, %v591
    %v641 = vpack.c.b16 %v594, %v593
    %v642 = vpack.c.b16 %v596, %v595
    %v643 = vpack.c.b16 %v598, %v597
    %v644 = vpack.c.b16 %v600, %v599
    %v645 = vpack.c.b16 %v602, %v601
    %v646 = vpack.c.b16 %v604, %v603
    %v647 = vpack.c.b16 %v606, %v605
    %v648 = vpack.c.b16 %v608, %v607
    %v649 = vpack.c.b16 %v610, %v609
    %v650 = vpack.c.b16 %v612, %v611
    %v651 = vpack.c.b16 %v614, %v613
    %v652 = vpack.c.b16 %v616, %v615
    %v653 = vpack.c.b16 %v618, %v617
    %v654 = vpack.c.b16 %v620, %v619
    %v655 = vpack.c.b16 %v622, %v621
    %v656 = vpack.c.b16 %v624, %v623
    %689 = vmatprep.subr.bf16.mxu0 0
    %690 = vmatpush1.bf16.msra.mxu0 %v625
    %691 = vmatprep.subr.bf16.mxu0 0
    %692 = vmatpush1.bf16.msra.mxu0 %v626
    %693 = vmatprep.subr.bf16.mxu0 0
    %694 = vmatpush1.bf16.msra.mxu0 %v627
    %695 = vmatprep.subr.bf16.mxu0 0
    %696 = vmatpush1.bf16.msra.mxu0 %v628
    %697 = vmatprep.subr.bf16.mxu0 0
    %698 = vmatpush1.bf16.msra.mxu0 %v629
    %699 = vmatprep.subr.bf16.mxu0 0
    %700 = vmatpush1.bf16.msra.mxu0 %v630
    %701 = vmatprep.subr.bf16.mxu0 0
    %702 = vmatpush1.bf16.msra.mxu0 %v631
    %703 = vmatprep.subr.bf16.mxu0 0
    %704 = vmatpush1.bf16.msra.mxu0 %v632
    %705 = vmatprep.subr.bf16.mxu0 0
    %706 = vmatpush1.bf16.msra.mxu0 %v633
    %707 = vmatprep.subr.bf16.mxu0 0
    %708 = vmatpush1.bf16.msra.mxu0 %v634
    %709 = vmatprep.subr.bf16.mxu0 0
    %710 = vmatpush1.bf16.msra.mxu0 %v635
    %711 = vmatprep.subr.bf16.mxu0 0
    %712 = vmatpush1.bf16.msra.mxu0 %v636
    %713 = vmatprep.subr.bf16.mxu0 0
    %714 = vmatpush1.bf16.msra.mxu0 %v637
    %715 = vmatprep.subr.bf16.mxu0 0
    %716 = vmatpush1.bf16.msra.mxu0 %v638
    %717 = vmatprep.subr.bf16.mxu0 0
    %718 = vmatpush1.bf16.msra.mxu0 %v639
    %719 = vmatprep.subr.bf16.mxu0 0
    %720 = vmatpush1.bf16.msra.mxu0 %v640
    %721 = vmatprep.mubr.bf16.mxu0 %v423
    %722 = vmatmul.mubr.bf16.gmra.mrb[0].mxu0 %v422
    %v723 = vpop.f32.mrb[0].mxu0
    %v724 = vadd.f32 %v495, %v723
    %v725 = vpop.f32.mrb[0].mxu0
    %v726 = vpop.f32.mrb[0].mxu0
    %v727 = vpop.f32.mrb[0].mxu0
    %728 = vdwg.mxu0
    %729 = vmatprep.subr.bf16.mxu0 0
    %730 = vmatpush1.bf16.msra.mxu0 %v641
    %731 = vmatprep.subr.bf16.mxu0 0
    %732 = vmatpush1.bf16.msra.mxu0 %v642
    %733 = vmatprep.subr.bf16.mxu0 0
    %734 = vmatpush1.bf16.msra.mxu0 %v643
    %735 = vmatprep.subr.bf16.mxu0 0
    %736 = vmatpush1.bf16.msra.mxu0 %v644
    %737 = vmatprep.subr.bf16.mxu0 0
    %738 = vmatpush1.bf16.msra.mxu0 %v645
    %739 = vmatprep.subr.bf16.mxu0 0
    %740 = vmatpush1.bf16.msra.mxu0 %v646
    %741 = vmatprep.subr.bf16.mxu0 0
    %742 = vmatpush1.bf16.msra.mxu0 %v647
    %743 = vmatprep.subr.bf16.mxu0 0
    %744 = vmatpush1.bf16.msra.mxu0 %v648
    %745 = vmatprep.subr.bf16.mxu0 0
    %746 = vmatpush1.bf16.msra.mxu0 %v649
    %747 = vmatprep.subr.bf16.mxu0 0
    %748 = vmatpush1.bf16.msra.mxu0 %v650
    %749 = vmatprep.subr.bf16.mxu0 0
    %750 = vmatpush1.bf16.msra.mxu0 %v651
    %751 = vmatprep.subr.bf16.mxu0 0
    %752 = vmatpush1.bf16.msra.mxu0 %v652
    %753 = vmatprep.subr.bf16.mxu0 0
    %754 = vmatpush1.bf16.msra.mxu0 %v653
    %755 = vmatprep.subr.bf16.mxu0 0
    %756 = vmatpush1.bf16.msra.mxu0 %v654
    %757 = vmatprep.subr.bf16.mxu0 0
    %758 = vmatpush1.bf16.msra.mxu0 %v655
    %759 = vmatprep.subr.bf16.mxu0 0
    %760 = vmatpush1.bf16.msra.mxu0 %v656
    %761 = vmatprep.mubr.bf16.mxu0 %v425
    %762 = vmatmul.mubr.bf16.gmra.mrb[0].mxu0 %v424
    %v763 = vpop.f32.mrb[0].mxu0
    %v764 = vadd.f32 %v724, %v763
    %v765 = vpop.f32.mrb[0].mxu0
    %v766 = vpop.f32.mrb[0].mxu0
    %v767 = vpop.f32.mrb[0].mxu0
    %768 = vdwg.mxu0
    %769 = vst [vmem:[#allocation11] sm:$0xff] %v764
    // Predicated region
    $region42: #{feedforward.1} parent=1 // pred_check
      _
    $region43: #{feedforward.1} parent=1 // pred_check_branch
      %771 = sbr.rel (0) target = $region45
    $region44: #{feedforward.1} parent=1 // pred_region
      %s773 = ssub.s32 128, 128
      %774 = vsyncadd [#allocation4], %s773
      %s776 = sshll.u32 [#allocation11], 4
      %s777 = int_to_ptr.vmem [resolvable:$true] %s776
      %779 = dma.vmem_to_hbm [thread:$0]  %s777, 128, %s5, [#allocation4]
    $region45: #{feedforward.1} parent=1 // pred_fallthru
      _
    // Predicated region
    $region46: #{feedforward.1} parent=1 // pred_check
      _
    $region47: #{feedforward.1} parent=1 // pred_check_branch
      %781 = sbr.rel (0) target = $region49
    $region48: #{feedforward.1} parent=1 // pred_region
      %782 = dma.done [#allocation4], 128
    $region49: #{feedforward.1} parent=1 // pred_fallthru
      _
    %783 = vsyncpa [#allocation3], 1
    %784 = vsyncpa [#allocation6], 1
    %785 = vsyncpa [#allocation9], 1
    %786 = vsyncpa [#allocation4], 1

</llo_original>
